<compile_context>
chip_gen: v6e
topology: v6e:2x2x1
jax: 0.10.0
libtpu: 0.0.40
codegen_flags: <defaults>
</compile_context>

<pallas_src>
import functools

import jax
import jax.numpy as jnp
from jax.experimental import pallas as pl
from jax.experimental.pallas import tpu as pltpu

EPS = 1e-5
LANE = 128


# ---------------------------------------------------------------------------
# Small helpers (host side).
# ---------------------------------------------------------------------------
def _round_up(n, m):
    return (n + m - 1) // m * m


def _pad_axis(x, axis, size):
    if x.shape[axis] == size:
        return x
    pad = [(0, 0)] * x.ndim
    pad[axis] = (0, size - x.shape[axis])
    return jnp.pad(x, pad)


def _largest_divisor_leq(n, cap):
    cap = max(1, min(cap, n))
    for d in range(cap, 0, -1):
        if n % d == 0:
            return d
    return 1


def _vmem_limit_bytes():
    """Generation-aware scoped-VMEM limit (v5e/v6e: 128 MiB, v7x: 64 MiB)."""
    cap = 64 * 1024 * 1024
    try:
        cap = int(pltpu.get_tpu_info().vmem_capacity_bytes)
    except Exception:
        pass
    return int(max(24 * 2**20, min(cap * 3 // 5, 96 * 2**20)))


@functools.lru_cache(maxsize=None)
def _roll_is_jnp_like():
    """Probe pltpu.roll's rotation direction once (True == jnp.roll semantics,
    element i moves to i+shift).  Keeps the 3x3 tap shifts correct regardless
    of the rotate-direction convention of the underlying XLU op."""
    def kernel(x_ref, o_ref):
        o_ref[...] = pltpu.roll(x_ref[...], 1, 0)

    x = jnp.arange(8 * 128, dtype=jnp.int32).reshape(8, 128)
    try:
        out = pl.pallas_call(
            kernel, out_shape=jax.ShapeDtypeStruct((8, 128), jnp.int32))(x)
        return bool(out[0, 0] == x[7, 0])
    except Exception:
        return True  # documented behaviour matches jnp.roll


# ---------------------------------------------------------------------------
# In-kernel BN partial statistics (per-tile sum and M2 about the tile mean;
# combined host-side with the parallel-variance formula -> less cancellation
# than E[y^2] - mean^2).
# ---------------------------------------------------------------------------
def _tile_stats(acc):
    rows = acc.shape[0]
    s = jnp.sum(acc, axis=0, keepdims=True)          # (1, C) channel sums
    mu = s * (1.0 / rows)
    d = acc - mu
    m2 = jnp.sum(d * d, axis=0, keepdims=True)       # (1, C) sum of sq. dev.
    return jnp.concatenate([s, m2], axis=0)          # (2, C)


def _bn_scale_shift(stats, rows_per_tile, gamma, beta):
    """Fold training-mode BN into per-channel scale/shift from tile partials."""
    c = stats.shape[-1]
    st = stats.reshape(-1, 2, c).astype(jnp.float32)
    sums, m2s = st[:, 0, :], st[:, 1, :]
    ntiles = st.shape[0]
    total = rows_per_tile * ntiles
    mean = jnp.sum(sums, axis=0) / total
    tile_mean = sums / rows_per_tile
    m2 = jnp.sum(m2s, axis=0) + rows_per_tile * jnp.sum(
        jnp.square(tile_mean - mean), axis=0)
    var = jnp.maximum(m2 / total, 0.0)               # biased var (as BN uses)
    inv = jax.lax.rsqrt(var + EPS)
    scale = gamma * inv
    shift = beta - mean * scale
    return scale.reshape(1, -1), shift.reshape(1, -1)


# ---------------------------------------------------------------------------
# 1x1 conv kernels (tiled matmul + BN partial stats).  The "fused" variant
# applies the previous layer's BN+ReLU to its input tile (review: removes a
# standalone normalize pass and its HBM round trip).
# ---------------------------------------------------------------------------
def _conv1x1_stats_kernel(x_ref, w_ref, y_ref, st_ref):
    _, th, tw, cin = x_ref.shape
    cout = y_ref.shape[3]
    x = x_ref[...].reshape(th * tw, cin).astype(w_ref.dtype)
    acc = jnp.dot(x, w_ref[...], preferred_element_type=jnp.float32)
    y_ref[...] = acc.reshape(1, th, tw, cout).astype(y_ref.dtype)
    st_ref[...] = _tile_stats(acc).reshape(st_ref.shape)


def _conv1x1_fusedbn_stats_kernel(x_ref, sc_ref, sh_ref, w_ref, y_ref, st_ref):
    _, th, tw, cin = x_ref.shape
    cout = y_ref.shape[3]
    a = x_ref[...].astype(jnp.float32).reshape(th * tw, cin)
    a = jnp.maximum(a * sc_ref[...] + sh_ref[...], 0.0)      # fused BN + ReLU
    acc = jnp.dot(a.astype(w_ref.dtype), w_ref[...],
                  preferred_element_type=jnp.float32)
    y_ref[...] = acc.reshape(1, th, tw, cout).astype(y_ref.dtype)
    st_ref[...] = _tile_stats(acc).reshape(st_ref.shape)


def _conv1x1_bn_stats(x4d, w2d, *, th, out_dtype, vmem_limit,
                      in_scale=None, in_shift=None):
    n, h, w, cin = x4d.shape
    cout = w2d.shape[1]
    hc = h // th
    x_spec = pl.BlockSpec((1, th, w, cin), lambda b, j: (b, j, 0, 0))
    w_spec = pl.BlockSpec((cin, cout), lambda b, j: (0, 0))   # weights VMEM-resident
    y_spec = pl.BlockSpec((1, th, w, cout), lambda b, j: (b, j, 0, 0))
    st_spec = pl.BlockSpec((1, 1, 2, cout), lambda b, j: (b, j, 0, 0))
    out_shape = (jax.ShapeDtypeStruct((n, h, w, cout), out_dtype),
                 jax.ShapeDtypeStruct((n, hc, 2, cout), jnp.float32))
    cp = pltpu.CompilerParams(dimension_semantics=("parallel", "parallel"),
                              vmem_limit_bytes=vmem_limit)
    if in_scale is None:
        return pl.pallas_call(
            _conv1x1_stats_kernel, out_shape=out_shape, grid=(n, hc),
            in_specs=[x_spec, w_spec], out_specs=(y_spec, st_spec),
            compiler_params=cp)(x4d, w2d)
    v_spec = pl.BlockSpec((1, cin), lambda b, j: (0, 0))
    return pl.pallas_call(
        _conv1x1_fusedbn_stats_kernel, out_shape=out_shape, grid=(n, hc),
        in_specs=[x_spec, v_spec, v_spec, w_spec], out_specs=(y_spec, st_spec),
        compiler_params=cp)(x4d, in_scale, in_shift, w2d)


# ---------------------------------------------------------------------------
# 3x3 conv (stride 1, pad 1) with BN1+ReLU fused on its input.  Each grid step
# handles one image: nine shifted matmuls where the spatial shift is an XLU
# roll of the flattened (H*W, C) tile plus boundary masks (no host-side
# spatial padding, no misaligned window slices, halo stays exactly zero).
# ---------------------------------------------------------------------------
def _make_conv3x3_kernel(roll_like_jnp):
    def kernel(y1_ref, sc_ref, sh_ref, col_ref, w_ref, y2_ref, st_ref):
        _, h, w, cin = y1_ref.shape
        cout = y2_ref.shape[3]
        hw = h * w

        # Fused BN1 + ReLU on the input tile (computed once per element).
        a = y1_ref[...].astype(jnp.float32).reshape(hw, cin)
        a = jnp.maximum(a * sc_ref[...] + sh_ref[...], 0.0)

        pos = jax.lax.broadcasted_iota(jnp.int32, (hw, 1), 0)   # flat index
        col = col_ref[...]                                      # column index
        ok = {
            -1: {"row": pos >= w, "col": col >= 1},
            1: {"row": pos < hw - w, "col": col < w - 1},
        }

        acc = jnp.zeros((hw, cout), jnp.float32)
        # TODO(synk): for very large H*W also chunk rows here (vreg-resident
        # accumulator) and tile H across the grid (manual-DMA halo) so one
        # image block stays inside v7x's smaller VMEM.
        for tap in range(9):                  # static unroll over the 3x3 taps
            dh, dw = tap // 3 - 1, tap % 3 - 1
            off = dh * w + dw
            patch = a
            if off != 0:
                shift = ((-off) if roll_like_jnp else off) % hw
                patch = pltpu.roll(a, shift, axis=0)   # XLU; hides under MXU
                mask = None
                if dh != 0:
                    mask = ok[dh]["row"]
                if dw != 0:
                    mask = ok[dw]["col"] if mask is None else (mask & ok[dw]["col"])
                patch = jnp.where(mask, patch, 0.0)
            acc = acc + jnp.dot(patch.astype(w_ref.dtype), w_ref[tap],
                                preferred_element_type=jnp.float32)

        y2_ref[...] = acc.reshape(1, h, w, cout).astype(y2_ref.dtype)
        st_ref[...] = _tile_stats(acc).reshape(st_ref.shape)

    return kernel


def _conv3x3_fusedbn_stats(y1, w9, sc, sh, *, out_dtype, vmem_limit):
    n, h, w, cin = y1.shape
    cout = w9.shape[2]
    hw = h * w
    col_idx = jnp.tile(jnp.arange(w, dtype=jnp.int32), h).reshape(hw, 1)
    kernel = _make_conv3x3_kernel(_roll_is_jnp_like())
    cp = pltpu.CompilerParams(dimension_semantics=("parallel",),
                              vmem_limit_bytes=vmem_limit)
    return pl.pallas_call(
        kernel,
        out_shape=(jax.ShapeDtypeStruct((n, h, w, cout), out_dtype),
                   jax.ShapeDtypeStruct((n, 2, cout), jnp.float32)),
        grid=(n,),
        in_specs=[pl.BlockSpec((1, h, w, cin), lambda b: (b, 0, 0, 0)),
                  pl.BlockSpec((1, cin), lambda b: (0, 0)),
                  pl.BlockSpec((1, cin), lambda b: (0, 0)),
                  pl.BlockSpec((hw, 1), lambda b: (0, 0)),
                  pl.BlockSpec((9, cin, cout), lambda b: (0, 0, 0))],
        out_specs=(pl.BlockSpec((1, h, w, cout), lambda b: (b, 0, 0, 0)),
                   pl.BlockSpec((1, 2, cout), lambda b: (b, 0, 0))),
        compiler_params=cp,
    )(y1, sc, sh, col_idx, w9)


# ---------------------------------------------------------------------------
# Final pass: BN3 + residual (f32) + ReLU.
# ---------------------------------------------------------------------------
def _bn_add_relu_kernel(y_ref, sc_ref, sh_ref, r_ref, o_ref):
    c = y_ref.shape[3]
    sc = sc_ref[...].reshape(1, 1, 1, c)
    sh = sh_ref[...].reshape(1, 1, 1, c)
    v = y_ref[...].astype(jnp.float32) * sc + sh + r_ref[...].astype(jnp.float32)
    o_ref[...] = jnp.maximum(v, 0.0).astype(o_ref.dtype)


def _bn_add_relu(y3, sc, sh, res, *, th, out_dtype, vmem_limit):
    n, h, w, c = y3.shape
    hc = h // th
    t_spec = pl.BlockSpec((1, th, w, c), lambda b, j: (b, j, 0, 0))
    v_spec = pl.BlockSpec((1, c), lambda b, j: (0, 0))
    cp = pltpu.CompilerParams(dimension_semantics=("parallel", "parallel"),
                              vmem_limit_bytes=vmem_limit)
    return pl.pallas_call(
        _bn_add_relu_kernel,
        out_shape=jax.ShapeDtypeStruct((n, h, w, c), out_dtype),
        grid=(n, hc),
        in_specs=[t_spec, v_spec, v_spec, t_spec],
        out_specs=t_spec,
        compiler_params=cp,
    )(y3, sc, sh, res)


# ---------------------------------------------------------------------------
# Bottleneck forward.
# ---------------------------------------------------------------------------
def bottleneck_forward_nhwc(x_nhwc, params, *, compute_dtype=jnp.bfloat16,
                            out_dtype=None):
    n, h, w, cin = x_nhwc.shape
    p = params["w1"].shape[0]                  # planes
    cexp = params["w3"].shape[0]               # planes * expansion
    assert cexp == cin, "downsample=None requires inplanes == planes * expansion"
    if out_dtype is None:
        out_dtype = x_nhwc.dtype
    cdt = compute_dtype

    cin_p = _round_up(cin, LANE)
    p_p = _round_up(p, LANE)

    vmem_limit = _vmem_limit_bytes()
    target_rows = 2048 if vmem_limit >= 64 * 2**20 else 1024   # generation-aware
    th = _largest_divisor_leq(h, max(1, target_rows // max(w, 1)))

    # Layout glue (plain JAX): one channel-padded f32 NHWC view of x, shared by
    # conv1's input and the full-precision residual add.
    x_p = _pad_axis(x_nhwc.astype(jnp.float32), 3, cin_p)

    # Weights in lane-dense (Cin, Cout) matmul layout, channel-padded.
    w1 = _pad_axis(_pad_axis(params["w1"].reshape(p, cin).T, 0, cin_p), 1, p_p).astype(cdt)
    w2 = jnp.transpose(params["w2"], (2, 3, 1, 0)).reshape(9, p, p)   # (kh*kw, Cin, Cout)
    w2 = _pad_axis(_pad_axis(w2, 1, p_p), 2, p_p).astype(cdt)
    w3 = _pad_axis(_pad_axis(params["w3"].reshape(cexp, p).T, 0, p_p), 1, cin_p).astype(cdt)

    g1 = _pad_axis(params["g1"].astype(jnp.float32), 0, p_p)
    b1 = _pad_axis(params["b1"].astype(jnp.float32), 0, p_p)
    g2 = _pad_axis(params["g2"].astype(jnp.float32), 0, p_p)
    b2 = _pad_axis(params["b2"].astype(jnp.float32), 0, p_p)
    g3 = _pad_axis(params["g3"].astype(jnp.float32), 0, cin_p)
    b3 = _pad_axis(params["b3"].astype(jnp.float32), 0, cin_p)

    # conv1 (1x1) -> y1 + BN1 partial stats.
    y1, st1 = _conv1x1_bn_stats(x_p, w1, th=th, out_dtype=cdt, vmem_limit=vmem_limit)
    sc1, sh1 = _bn_scale_shift(st1, th * w, g1, b1)

    # conv2 (3x3, s=1, p=1) with BN1+ReLU fused on its input -> y2 + BN2 stats.
    y2, st2 = _conv3x3_fusedbn_stats(y1, w2, sc1, sh1, out_dtype=cdt,
                                     vmem_limit=vmem_limit)
    sc2, sh2 = _bn_scale_shift(st2, h * w, g2, b2)

    # conv3 (1x1) with BN2+ReLU fused on its input -> y3 + BN3 stats.
    y3, st3 = _conv1x1_bn_stats(y2, w3, th=th, out_dtype=cdt, vmem_limit=vmem_limit,
                                in_scale=sc2, in_shift=sh2)
    sc3, sh3 = _bn_scale_shift(st3, th * w, g3, b3)

    # BN3 + residual (f32) + ReLU, written in the caller's dtype.
    out = _bn_add_relu(y3, sc3, sh3, x_p, th=th, out_dtype=out_dtype,
                       vmem_limit=vmem_limit)
    return out[..., :cexp]


def bottleneck_forward(x_nchw, params, *, compute_dtype=jnp.bfloat16):
    """Bottleneck.forward (ibn=False, stride=1, downsample=None), NCHW in/out."""
    # TODO(synk): NCHW<->NHWC transposes are host-side glue (one extra HBM
    # round trip each on a memory-bound block); keep activations NHWC
    # end-to-end in a real pipeline, or fold the transpose into the caller.
    x_nhwc = jnp.transpose(x_nchw, (0, 2, 3, 1))
    out = bottleneck_forward_nhwc(x_nhwc, params, compute_dtype=compute_dtype)
    return jnp.transpose(out, (0, 3, 1, 2))


# ---------------------------------------------------------------------------
# Pure-JAX reference (lax conv, training-mode BN) for correctness checking.
# ---------------------------------------------------------------------------
def reference_forward(x, params):
    def bn(y, g, b):
        mean = jnp.mean(y, axis=(0, 2, 3), keepdims=True)
        var = jnp.mean(jnp.square(y - mean), axis=(0, 2, 3), keepdims=True)
        return (y - mean) * jax.lax.rsqrt(var + EPS) * g.reshape(1, -1, 1, 1) \
               + b.reshape(1, -1, 1, 1)

    def conv(x, w, pad):
        return jax.lax.conv_general_dilated(
            x, w, (1, 1), pad, dimension_numbers=("NCHW", "OIHW", "NCHW"))

    out = jax.nn.relu(bn(conv(x, params["w1"], "VALID"), params["g1"], params["b1"]))
    out = jax.nn.relu(bn(conv(out, params["w2"], ((1, 1), (1, 1))), params["g2"], params["b2"]))
    out = bn(conv(out, params["w3"], "VALID"), params["g3"], params["b3"])
    return jax.nn.relu(out + x)


if __name__ == "__main__":
    # Small shapes consistent with the module: inplanes = planes * expansion so
    # that downsample=None (identity residual) is valid.
    N, planes, H, W = 2, 8, 16, 16
    expansion = 4
    inplanes = planes * expansion          # 32

    key = jax.random.PRNGKey(0)
    k = jax.random.split(key, 9)

    params = {
        # conv weights in PyTorch OIHW layout
        "w1": 0.1 * jax.random.normal(k[0], (planes, inplanes, 1, 1), jnp.float32),
        "w2": 0.1 * jax.random.normal(k[1], (planes, planes, 3, 3), jnp.float32),
        "w3": 0.1 * jax.random.normal(k[2], (planes * expansion, planes, 1, 1), jnp.float32),
        # BN affine params (perturbed to exercise the affine path)
        "g1": 1.0 + 0.1 * jax.random.normal(k[3], (planes,), jnp.float32),
        "b1": 0.1 * jax.random.normal(k[4], (planes,), jnp.float32),
        "g2": 1.0 + 0.1 * jax.random.normal(k[5], (planes,), jnp.float32),
        "b2": 0.1 * jax.random.normal(k[6], (planes,), jnp.float32),
        "g3": 1.0 + 0.1 * jax.random.normal(k[7], (planes * expansion,), jnp.float32),
        "b3": jnp.zeros((planes * expansion,), jnp.float32),
    }

    x = jax.random.normal(k[8], (N, inplanes, H, W), jnp.float32)

    ref = jax.block_until_ready(reference_forward(x, params))

    # Strict check in f32 compute mode (same math as the PyTorch module).
    out_f32 = jax.block_until_ready(
        bottleneck_forward(x, params, compute_dtype=jnp.float32))
    assert out_f32.shape == (N, planes * expansion, H, W)
    err32 = float(jnp.max(jnp.abs(out_f32 - ref)))
    assert err32 < 2e-3, f"f32 mismatch vs reference: {err32}"

    # Performance mode: bf16 MXU inputs / bf16 intermediates, f32 accumulation.
    out_bf16 = jax.block_until_ready(
        bottleneck_forward(x, params, compute_dtype=jnp.bfloat16))
    errbf = float(jnp.max(jnp.abs(out_bf16 - ref)))
    assert errbf < 1.5e-1, f"bf16 mismatch vs reference: {errbf}"

    print("KERNEL_OK")
</pallas_src>

<mosaic_0001>
module attributes {stable_mosaic.version = 11 : i64} {
  func.func @_conv1x1_stats_kernel(%arg0: i32, %arg1: i32, %arg2: memref<1x16x16x128xf32, #tpu.memory_space<vmem>>, %arg3: memref<128x128xf32, #tpu.memory_space<vmem>>, %arg4: memref<1x16x16x128xf32, #tpu.memory_space<vmem>>, %arg5: memref<1x1x2x128xf32, #tpu.memory_space<vmem>>) attributes {dimension_semantics = [#tpu.dimension_semantics<parallel>, #tpu.dimension_semantics<parallel>], iteration_bounds = array<i64: 2, 1>, scalar_prefetch = 0 : i64, scratch_operands = 0 : i64, tpu.core_type = #tpu.core_type<tc>, window_params = [{transform_indices = @transform_0, window_bounds = array<i64: 1, 16, 16, 128>}, {pipeline_mode = #tpu.pipeline_mode<synchronous>, transform_indices = @transform_1, window_bounds = array<i64: 128, 128>}, {transform_indices = @transform_2, window_bounds = array<i64: 1, 16, 16, 128>}, {transform_indices = @transform_3, window_bounds = array<i64: 1, 1, 2, 128>}]} {
    %c0 = arith.constant 0 : index
    %c0_0 = arith.constant 0 : index
    %c0_1 = arith.constant 0 : index
    %c0_2 = arith.constant 0 : index
    %0 = vector.load %arg2[%c0, %c0_0, %c0_1, %c0_2] : memref<1x16x16x128xf32, #tpu.memory_space<vmem>>, vector<1x16x16x128xf32>
    %1 = vector.shape_cast %0 : vector<1x16x16x128xf32> to vector<256x128xf32>
    %c0_3 = arith.constant 0 : index
    %c0_4 = arith.constant 0 : index
    %2 = vector.load %arg3[%c0_3, %c0_4] : memref<128x128xf32, #tpu.memory_space<vmem>>, vector<128x128xf32>
    %cst = arith.constant dense<0.000000e+00> : vector<256x128xf32>
    %3 = tpu.matmul %1, %2, %cst {dimension_numbers = #tpu.dot_dimension_numbers<[1], [0], [0], [1], [0, 0, 1, 1], [], []>} : vector<256x128xf32>, vector<128x128xf32>, vector<256x128xf32> -> vector<256x128xf32>
    %4 = vector.shape_cast %3 : vector<256x128xf32> to vector<1x16x16x128xf32>
    %c0_5 = arith.constant 0 : index
    %c0_6 = arith.constant 0 : index
    %c0_7 = arith.constant 0 : index
    %c0_8 = arith.constant 0 : index
    %5 = vector.load %arg4[%c0_5, %c0_6, %c0_7, %c0_8] : memref<1x16x16x128xf32, #tpu.memory_space<vmem>>, vector<1x16x16x128xf32>
    tpu.vector_store %arg4[%c0_5, %c0_6, %c0_7, %c0_8], %4 {strides = array<i32>} : memref<1x16x16x128xf32, #tpu.memory_space<vmem>>, vector<1x16x16x128xf32>,
    %cst_9 = arith.constant dense<0.000000e+00> : vector<128xf32>
    %6 = vector.multi_reduction <add>, %3, %cst_9 [0] : vector<256x128xf32> to vector<128xf32>
    %7 = vector.shape_cast %6 : vector<128xf32> to vector<1x128xf32>
    %cst_10 = arith.constant 3.906250e-03 : f32
    %8 = vector.broadcast %cst_10 : f32 to vector<1x128xf32>
    %9 = arith.mulf %7, %8 : vector<1x128xf32>
    %10 = vector.broadcast %9 : vector<1x128xf32> to vector<256x128xf32>
    %11 = arith.subf %3, %10 : vector<256x128xf32>
    %12 = arith.mulf %11, %11 : vector<256x128xf32>
    %cst_11 = arith.constant dense<0.000000e+00> : vector<128xf32>
    %13 = vector.multi_reduction <add>, %12, %cst_11 [0] : vector<256x128xf32> to vector<128xf32>
    %14 = vector.shape_cast %13 : vector<128xf32> to vector<1x128xf32>
    %15 = tpu.concatenate %7, %14 in 0 : vector<1x128xf32>, vector<1x128xf32> -> vector<2x128xf32>
    %16 = vector.shape_cast %15 : vector<2x128xf32> to vector<1x1x2x128xf32>
    %c0_12 = arith.constant 0 : index
    %c0_13 = arith.constant 0 : index
    %c0_14 = arith.constant 0 : index
    %c0_15 = arith.constant 0 : index
    %17 = vector.load %arg5[%c0_12, %c0_13, %c0_14, %c0_15] : memref<1x1x2x128xf32, #tpu.memory_space<vmem>>, vector<1x1x2x128xf32>
    tpu.vector_store %arg5[%c0_12, %c0_13, %c0_14, %c0_15], %16 {strides = array<i32>} : memref<1x1x2x128xf32, #tpu.memory_space<vmem>>, vector<1x1x2x128xf32>,
    return
  }
  func.func @transform_0(%arg0: i32, %arg1: i32) -> (i32, i32, i32, i32) {
    %c0_i32 = arith.constant 0 : i32
    %c0_i32_0 = arith.constant 0 : i32
    %c0_i32_1 = arith.constant 0 : i32
    return %arg0, %arg1, %c0_i32, %c0_i32_0 : i32, i32, i32, i32
  }
  func.func @transform_1(%arg0: i32, %arg1: i32) -> (i32, i32) {
    %c0_i32 = arith.constant 0 : i32
    %c0_i32_0 = arith.constant 0 : i32
    %c0_i32_1 = arith.constant 0 : i32
    return %c0_i32, %c0_i32_0 : i32, i32
  }
  func.func @transform_2(%arg0: i32, %arg1: i32) -> (i32, i32, i32, i32) {
    %c0_i32 = arith.constant 0 : i32
    %c0_i32_0 = arith.constant 0 : i32
    %c0_i32_1 = arith.constant 0 : i32
    return %arg0, %arg1, %c0_i32, %c0_i32_0 : i32, i32, i32, i32
  }
  func.func @transform_3(%arg0: i32, %arg1: i32) -> (i32, i32, i32, i32) {
    %c0_i32 = arith.constant 0 : i32
    %c0_i32_0 = arith.constant 0 : i32
    %c0_i32_1 = arith.constant 0 : i32
    return %arg0, %arg1, %c0_i32, %c0_i32_0 : i32, i32, i32, i32
  }
}

</mosaic_0001>

<llo_original>
// kernel: tpu_custom_call.1
$region0: #{tpu_custom_call.1}
  #allocation0 [shape = 'u32[]', space=smem, size = 0x4, offset = 0x4, fixed_abs, tag = 'smem constant byte address 0x4 - core index']
  #allocation1 [shape = 'u32[144,128]{1,0:T(1,128)}', space=vmem, size = 0x12000, scoped, tag = 'internal scratch']
  %s0 = inlined_call_operand.hbm [shape: f32[2,16,16,128], index: 0, kind: input, shape index: {}]
  %s1 = inlined_call_operand.hbm [shape: f32[128,128], index: 1, kind: input, shape index: {}]
  %s2 = inlined_call_operand.hbm [shape: f32[2,16,16,128], index: 2, kind: output, shape index: {0}]
  %s3 = inlined_call_operand.hbm [shape: f32[2,1,2,128], index: 3, kind: output, shape index: {1}]
  %4 = xla_tuple %s2, %s3
  %s5 = sld [smem:[#allocation0]]
  $region57: #{tpu_custom_call.1} parent=0
    _
  %s7 = ssub.s32 1, %s5
  %s8 = scalar_select 0, %s7, %s5
  $region1: #{tpu_custom_call.1} parent=0
    #allocation2 [shape = 'u8[262144]{0}', space=vmem, size = 0x40000, scoped, tag = 'input window, operand 0']
    #allocation3 [shape = 's32[2]{0}', space=sflag, size = 0x8, scoped, tag = 'scoped memory for tpu_custom_call.1']
    #allocation4 [shape = 's32[2]{0}', space=sflag, size = 0x8, scoped, tag = 'scoped memory for tpu_custom_call.1']
    #allocation5 [shape = 'u8[65536]{0}', space=vmem, size = 0x10000, scoped, tag = 'input window, operand 1, single buffered']
    #allocation6 [shape = 's32[1]{0}', space=sflag, size = 0x4, scoped, tag = 'scoped memory for tpu_custom_call.1']
    #allocation7 [shape = 'u8[262144]{0}', space=vmem, size = 0x40000, scoped, tag = 'output window, operand 0']
    #allocation8 [shape = 'u8[2048]{0}', space=vmem, size = 0x800, scoped, tag = 'output window, operand 1']
    #allocation9 [shape = 's32[2]{0}', space=sflag, size = 0x8, scoped, tag = 'scoped memory for tpu_custom_call.1']
    %9 = vsyncpa [#allocation3], 0
    %s10 = scalar_lea.sflag [#allocation3], 1
    %11 = vsyncpa %s10, 0
    %12 = vsyncpa [#allocation6], 0
    %13 = vsyncpa [#allocation4], 0
    %s14 = scalar_lea.sflag [#allocation4], 1
    %15 = vsyncpa %s14, 0
    %16 = vsyncpa [#allocation9], 0
    %s17 = scalar_lea.sflag [#allocation9], 1
    %18 = vsyncpa %s17, 0
    loop: start=0, step=1, limit=4
    $region2: #{tpu_custom_call.1} parent=1 // loop_pre_header
      _
    $region3: #{tpu_custom_call.1} parent=1 // loop_header
      %s20 = sphi 0, %s24
      %p21 = scmp.ge.s32.totalorder %s20, 4
      %s27 = sphi 0, %s39
      %s28 = sphi 0, %s35
      %s29 = sphi 0, %s27
      %s30 = sphi 0, %s28
      %s31 = sphi 0, %s29
      %s32 = sphi 0, %s30
      %s44 = sphi 0, %s46
      %s47 = sphi 0, %s44
      %s48 = sphi 0, %s47
      %s64 = sphi 0, %s48
      %s68 = sphi 0, %s68
      %s70 = sphi 0, %s68
      %s71 = sphi 0, %s70
      %s85 = sphi 0, %s71
      %s93 = sphi 0, %s95
      %s96 = sphi 0, %s93
      %s97 = sphi 0, %s96
      %s113 = sphi 0, %s97
      %s121 = sphi 0, %s123
      %s124 = sphi 0, %s121
      %s125 = sphi 0, %s124
      %s141 = sphi 0, %s125
    $region4: #{tpu_custom_call.1} parent=1 // loop_header_branch
      %23 = sbr.rel (%p21) target = $region8
    $region5: #{tpu_custom_call.1} parent=1 // loop_body
      %s25 = ssub.s32 %s20, 1
      %s26 = ssub.s32 %s20, 2
      %s33 = sadd.s32 1, %s28
      %p34 = scmp.ge.s32.totalorder %s33, 1
      %s35 = scalar_select %p34, 0, %s33
      %s36 = sadd.s32 1, %s27
      %s37 = scalar_select %p34, %s36, %s27
      %p38 = scmp.ge.s32.totalorder %s37, 2
      %s39 = scalar_select %p38, 0, %s37
      %s40 = ssub.s32 %s27, %s39
      %s41 = ssub.s32 %s28, %s35
      %s42 = sor.u32 %s40, %s41
      %p43 = scmp.eq.s32.totalorder %s42, 0
      %s45 = sadd.s32 %s44, 1
      %s46 = scalar_select %p43, %s44, %s45
      %p49 = pneg %p43
      %p50 = scmp.eq.s32.totalorder %s20, 1
      %p51 = por %p49, %p50
      %p52 = scmp.ne.s32.totalorder %s44, %s47
      %p53 = scmp.eq.s32.totalorder %s20, 0
      %p54 = por %p52, %p53
      %p55 = scmp.ne.s32.totalorder %s44, %s47
      %p56 = scmp.eq.s32.totalorder %s25, 1
      %p57 = por %p55, %p56
      %p58 = scmp.ne.s32.totalorder %s47, %s48
      %p59 = scmp.eq.s32.totalorder %s25, 0
      %p60 = por %p58, %p59
      %p61 = scmp.ne.s32.totalorder %s47, %s48
      %p62 = scmp.eq.s32.totalorder %s26, 1
      %p63 = por %p61, %p62
      %p65 = scmp.ne.s32.totalorder %s48, %s64
      %p66 = scmp.eq.s32.totalorder %s26, 0
      %p67 = por %p65, %p66
      %s69 = sadd.s32 %s68, 1
      %p72 = scmp.eq.s32.totalorder %s20, 1
      %p73 = scmp.ne.s32.totalorder %s68, %s70
      %p74 = scmp.eq.s32.totalorder %s20, 0
      %p75 = por %p73, %p74
      %p76 = scmp.ne.s32.totalorder %s68, %s70
      %p77 = scmp.eq.s32.totalorder %s25, 1
      %p78 = por %p76, %p77
      %p79 = scmp.ne.s32.totalorder %s70, %s71
      %p80 = scmp.eq.s32.totalorder %s25, 0
      %p81 = por %p79, %p80
      %p82 = scmp.ne.s32.totalorder %s70, %s71
      %p83 = scmp.eq.s32.totalorder %s26, 1
      %p84 = por %p82, %p83
      %p86 = scmp.ne.s32.totalorder %s71, %s85
      %p87 = scmp.eq.s32.totalorder %s26, 0
      %p88 = por %p86, %p87
      %s89 = ssub.s32 %s27, %s39
      %s90 = ssub.s32 %s28, %s35
      %s91 = sor.u32 %s89, %s90
      %p92 = scmp.eq.s32.totalorder %s91, 0
      %s94 = sadd.s32 %s93, 1
      %s95 = scalar_select %p92, %s93, %s94
      %p98 = pneg %p92
      %p99 = scmp.eq.s32.totalorder %s20, 1
      %p100 = por %p98, %p99
      %p101 = scmp.ne.s32.totalorder %s93, %s96
      %p102 = scmp.eq.s32.totalorder %s20, 0
      %p103 = por %p101, %p102
      %p104 = scmp.ne.s32.totalorder %s93, %s96
      %p105 = scmp.eq.s32.totalorder %s25, 1
      %p106 = por %p104, %p105
      %p107 = scmp.ne.s32.totalorder %s96, %s97
      %p108 = scmp.eq.s32.totalorder %s25, 0
      %p109 = por %p107, %p108
      %p110 = scmp.ne.s32.totalorder %s96, %s97
      %p111 = scmp.eq.s32.totalorder %s26, 1
      %p112 = por %p110, %p111
      %p114 = scmp.ne.s32.totalorder %s97, %s113
      %p115 = scmp.eq.s32.totalorder %s26, 0
      %p116 = por %p114, %p115
      %s117 = ssub.s32 %s27, %s39
      %s118 = ssub.s32 %s28, %s35
      %s119 = sor.u32 %s117, %s118
      %p120 = scmp.eq.s32.totalorder %s119, 0
      %s122 = sadd.s32 %s121, 1
      %s123 = scalar_select %p120, %s121, %s122
      %p126 = pneg %p120
      %p127 = scmp.eq.s32.totalorder %s20, 1
      %p128 = por %p126, %p127
      %p129 = scmp.ne.s32.totalorder %s121, %s124
      %p130 = scmp.eq.s32.totalorder %s20, 0
      %p131 = por %p129, %p130
      %p132 = scmp.ne.s32.totalorder %s121, %s124
      %p133 = scmp.eq.s32.totalorder %s25, 1
      %p134 = por %p132, %p133
      %p135 = scmp.ne.s32.totalorder %s124, %s125
      %p136 = scmp.eq.s32.totalorder %s25, 0
      %p137 = por %p135, %p136
      %p138 = scmp.ne.s32.totalorder %s124, %s125
      %p139 = scmp.eq.s32.totalorder %s26, 1
      %p140 = por %p138, %p139
      %p142 = scmp.ne.s32.totalorder %s125, %s141
      %p143 = scmp.eq.s32.totalorder %s26, 0
      %p144 = por %p142, %p143
      %p145 = scmp.le.s32.totalorder 1, %s20
      %p146 = scmp.lt.s32.totalorder %s20, 3
      %p147 = pnand %p145, %p146
      %p148 = pneg %p147
      // Predicated region
      $region9: #{tpu_custom_call.1} parent=5 // pred_check
        _
      $region10: #{tpu_custom_call.1} parent=5 // pred_check_branch
        %150 = sbr.rel (%p147) target = $region12
      $region11: #{tpu_custom_call.1} parent=5 // pred_region
        %s151 = ssub.s32 %s20, 1
        // Predicated region
        $region13: #{tpu_custom_call.1} parent=11 // pred_check
          %p152 = pneg %p81
        $region14: #{tpu_custom_call.1} parent=11 // pred_check_branch
          %154 = sbr.rel (%p152) target = $region16
        $region15: #{tpu_custom_call.1} parent=11 // pred_region
          %s156 = ssub.s32 2048, 2048
          %157 = vsyncadd [#allocation6], %s156
          %s158 = sshll.u32 [#allocation5], 4
          %s159 = int_to_ptr.vmem [resolvable:$true] %s158
          %164 = dma.hbm_to_vmem [thread:$0]  %s1, 2048, %s159, [#allocation6], 128, 128, 8
        $region16: #{tpu_custom_call.1} parent=11 // pred_fallthru
          _
      $region12: #{tpu_custom_call.1} parent=5 // pred_fallthru
        _
      %p165 = scmp.lt.s32.totalorder %s20, 2
      // Predicated region
      $region17: #{tpu_custom_call.1} parent=5 // pred_check
        %p166 = pneg %p165
      $region18: #{tpu_custom_call.1} parent=5 // pred_check_branch
        %168 = sbr.rel (%p166) target = $region20
      $region19: #{tpu_custom_call.1} parent=5 // pred_region
        // Predicated region
        $region21: #{tpu_custom_call.1} parent=19 // pred_check
          %p169 = pneg %p54
        $region22: #{tpu_custom_call.1} parent=19 // pred_check_branch
          %171 = sbr.rel (%p169) target = $region24
        $region23: #{tpu_custom_call.1} parent=19 // pred_region
          %s172 = sand.u32 %s44, 1
          %s173 = scalar_lea.sflag [#allocation3], %s172
          %s174 = sand.u32 %s44, 1
          %s175 = smul.addr %s174, 256
          %s176 = scalar_lea.vmem [#allocation2], %s175
          %s177 = smul.u32 16, %s28
          %s179 = ssub.s32 4096, 4096
          %180 = vsyncadd %s173, %s179
          %s181 = smul.addr %s177, 2
          %s182 = smul.addr %s27, 32
          %s183 = sadd.s32 %s181, %s182
          %s184 = smul.addr %s183, 128
          %s185 = scalar_lea.hbm %s0, %s184
          %s186 = sshll.u32 %s176, 4
          %s187 = int_to_ptr.vmem [resolvable:$true] %s186
          %192 = dma.hbm_to_vmem [thread:$0]  %s185, 4096, %s187, %s173, 128, 128, 8
        $region24: #{tpu_custom_call.1} parent=19 // pred_fallthru
          _
      $region20: #{tpu_custom_call.1} parent=5 // pred_fallthru
        _
      %p193 = scmp.le.s32.totalorder 1, %s20
      %p194 = scmp.lt.s32.totalorder %s20, 3
      %p195 = pnand %p193, %p194
      %p196 = pneg %p195
      // Predicated region
      $region25: #{tpu_custom_call.1} parent=5 // pred_check
        _
      $region26: #{tpu_custom_call.1} parent=5 // pred_check_branch
        %198 = sbr.rel (%p195) target = $region28
      $region27: #{tpu_custom_call.1} parent=5 // pred_region
        %s199 = ssub.s32 %s20, 1
        %s200 = sand.u32 %s47, 1
        %s201 = scalar_lea.sflag [#allocation3], %s200
        %s202 = sand.u32 %s47, 1
        %s203 = smul.addr %s202, 256
        %s204 = scalar_lea.vmem [#allocation2], %s203
        // Predicated region
        $region29: #{tpu_custom_call.1} parent=27 // pred_check
          %p205 = pneg %p60
        $region30: #{tpu_custom_call.1} parent=27 // pred_check_branch
          %207 = sbr.rel (%p205) target = $region32
        $region31: #{tpu_custom_call.1} parent=27 // pred_region
          %208 = dma.done %s201, 4096
        $region32: #{tpu_custom_call.1} parent=27 // pred_fallthru
          _
        // Predicated region
        $region33: #{tpu_custom_call.1} parent=27 // pred_check
          %p209 = pneg %p81
        $region34: #{tpu_custom_call.1} parent=27 // pred_check_branch
          %211 = sbr.rel (%p209) target = $region36
        $region35: #{tpu_custom_call.1} parent=27 // pred_region
          %212 = dma.done [#allocation6], 2048
        $region36: #{tpu_custom_call.1} parent=27 // pred_fallthru
          _
        %s213 = sand.u32 %s47, 1
        %s214 = scalar_lea.sflag [#allocation3], %s213
        %s215 = sand.u32 %s47, 1
        %s216 = smul.addr %s215, 256
        %s217 = scalar_lea.vmem [#allocation2], %s216
        %p218 = pneg %p60
        %p219 = pneg %p57
        %p220 = pneg %p81
        %p221 = pneg %p78
        %p222 = pneg %p109
        %p223 = pneg %p106
        %s224 = sand.u32 %s96, 1
        %s225 = scalar_lea.sflag [#allocation4], %s224
        %s226 = sand.u32 %s96, 1
        %s227 = smul.addr %s226, 256
        %s228 = scalar_lea.vmem [#allocation7], %s227
        %p229 = pneg %p137
        %p230 = pneg %p134
        %s231 = sand.u32 %s124, 1
        %s232 = scalar_lea.sflag [#allocation9], %s231
        %s233 = sand.u32 %s124, 1
        %s234 = smul.addr %s233, 2
        %s235 = scalar_lea.vmem [#allocation8], %s234
        %s236 = smul.u32 16, %s30
        %s237 = smul.u32 16, %s30
        %v238 = vld [vmem:[%s204] sm:$0xff]
        %v239 = vld [vmem:[%s204 + $0x8] sm:$0xff]
        %v240 = vld [vmem:[%s204 + $0x10] sm:$0xff]
        %v241 = vld [vmem:[%s204 + $0x18] sm:$0xff]
        %v242 = vld [vmem:[%s204 + $0x20] sm:$0xff]
        %v243 = vld [vmem:[%s204 + $0x28] sm:$0xff]
        %v244 = vld [vmem:[%s204 + $0x30] sm:$0xff]
        %v245 = vld [vmem:[%s204 + $0x38] sm:$0xff]
        %v246 = vld [vmem:[%s204 + $0x40] sm:$0xff]
        %v247 = vld [vmem:[%s204 + $0x48] sm:$0xff]
        %v248 = vld [vmem:[%s204 + $0x50] sm:$0xff]
        %v249 = vld [vmem:[%s204 + $0x58] sm:$0xff]
        %v250 = vld [vmem:[%s204 + $0x60] sm:$0xff]
        %v251 = vld [vmem:[%s204 + $0x68] sm:$0xff]
        %v252 = vld [vmem:[%s204 + $0x70] sm:$0xff]
        %v253 = vld [vmem:[%s204 + $0x78] sm:$0xff]
        %v254 = vld [vmem:[%s204 + $0x80] sm:$0xff]
        %v255 = vld [vmem:[%s204 + $0x88] sm:$0xff]
        %v256 = vld [vmem:[%s204 + $0x90] sm:$0xff]
        %v257 = vld [vmem:[%s204 + $0x98] sm:$0xff]
        %v258 = vld [vmem:[%s204 + $0xa0] sm:$0xff]
        %v259 = vld [vmem:[%s204 + $0xa8] sm:$0xff]
        %v260 = vld [vmem:[%s204 + $0xb0] sm:$0xff]
        %v261 = vld [vmem:[%s204 + $0xb8] sm:$0xff]
        %v262 = vld [vmem:[%s204 + $0xc0] sm:$0xff]
        %v263 = vld [vmem:[%s204 + $0xc8] sm:$0xff]
        %v264 = vld [vmem:[%s204 + $0xd0] sm:$0xff]
        %v265 = vld [vmem:[%s204 + $0xd8] sm:$0xff]
        %v266 = vld [vmem:[%s204 + $0xe0] sm:$0xff]
        %v267 = vld [vmem:[%s204 + $0xe8] sm:$0xff]
        %v268 = vld [vmem:[%s204 + $0xf0] sm:$0xff]
        %v269 = vld [vmem:[%s204 + $0xf8] sm:$0xff]
        %v270 = vld [vmem:[#allocation5] sm:$0xff]
        %v271 = vld [vmem:[#allocation5 + $0x8] sm:$0xff]
        %v272 = vld [vmem:[#allocation5 + $0x10] sm:$0xff]
        %v273 = vld [vmem:[#allocation5 + $0x18] sm:$0xff]
        %v274 = vld [vmem:[#allocation5 + $0x20] sm:$0xff]
        %v275 = vld [vmem:[#allocation5 + $0x28] sm:$0xff]
        %v276 = vld [vmem:[#allocation5 + $0x30] sm:$0xff]
        %v277 = vld [vmem:[#allocation5 + $0x38] sm:$0xff]
        %v278 = vld [vmem:[#allocation5 + $0x40] sm:$0xff]
        %v279 = vld [vmem:[#allocation5 + $0x48] sm:$0xff]
        %v280 = vld [vmem:[#allocation5 + $0x50] sm:$0xff]
        %v281 = vld [vmem:[#allocation5 + $0x58] sm:$0xff]
        %v282 = vld [vmem:[#allocation5 + $0x60] sm:$0xff]
        %v283 = vld [vmem:[#allocation5 + $0x68] sm:$0xff]
        %v284 = vld [vmem:[#allocation5 + $0x70] sm:$0xff]
        %v285 = vld [vmem:[#allocation5 + $0x78] sm:$0xff]
        %286 = vmatprep.subr.mxu0 0.0
        %287 = vmatpush1.msra.mxu0 %v285
        %288 = vmatprep.subr.mxu0 0.0
        %289 = vmatpush1.msra.mxu0 %v284
        %290 = vmatprep.subr.mxu0 0.0
        %291 = vmatpush1.msra.mxu0 %v283
        %292 = vmatprep.subr.mxu0 0.0
        %293 = vmatpush1.msra.mxu0 %v282
        %294 = vmatprep.subr.mxu0 0.0
        %295 = vmatpush1.msra.mxu0 %v281
        %296 = vmatprep.subr.mxu0 0.0
        %297 = vmatpush1.msra.mxu0 %v280
        %298 = vmatprep.subr.mxu0 0.0
        %299 = vmatpush1.msra.mxu0 %v279
        %300 = vmatprep.subr.mxu0 0.0
        %301 = vmatpush1.msra.mxu0 %v278
        %302 = vmatprep.subr.mxu0 0.0
        %303 = vmatpush1.msra.mxu0 %v277
        %304 = vmatprep.subr.mxu0 0.0
        %305 = vmatpush1.msra.mxu0 %v276
        %306 = vmatprep.subr.mxu0 0.0
        %307 = vmatpush1.msra.mxu0 %v275
        %308 = vmatprep.subr.mxu0 0.0
        %309 = vmatpush1.msra.mxu0 %v274
        %310 = vmatprep.subr.mxu0 0.0
        %311 = vmatpush1.msra.mxu0 %v273
        %312 = vmatprep.subr.mxu0 0.0
        %313 = vmatpush1.msra.mxu0 %v272
        %314 = vmatprep.subr.mxu0 0.0
        %315 = vmatpush1.msra.mxu0 %v271
        %316 = vmatprep.subr.mxu0 0.0
        %317 = vmatpush1.msra.mxu0 %v270
        %318 = vmatprep.subr.mxu0 0.0
        %319 = vmatpush2.msra.mxu0 0.0
        %320 = vmatprep.subr.mxu0 0.0
        %321 = vmatpush2.msra.mxu0 0.0
        %322 = vmatprep.subr.mxu0 0.0
        %323 = vmatpush2.msra.mxu0 0.0
        %324 = vmatprep.subr.mxu0 0.0
        %325 = vmatpush2.msra.mxu0 0.0
        %326 = vmatprep.subr.mxu0 0.0
        %327 = vmatpush2.msra.mxu0 0.0
        %328 = vmatprep.subr.mxu0 0.0
        %329 = vmatpush2.msra.mxu0 0.0
        %330 = vmatprep.subr.mxu0 0.0
        %331 = vmatpush2.msra.mxu0 0.0
        %332 = vmatprep.subr.mxu0 0.0
        %333 = vmatpush2.msra.mxu0 0.0
        %334 = vmatprep.subr.mxu0 0.0
        %335 = vmatpush2.msra.mxu0 0.0
        %336 = vmatprep.subr.mxu0 0.0
        %337 = vmatpush2.msra.mxu0 0.0
        %338 = vmatprep.subr.mxu0 0.0
        %339 = vmatpush2.msra.mxu0 0.0
        %340 = vmatprep.subr.mxu0 0.0
        %341 = vmatpush2.msra.mxu0 0.0
        %342 = vmatprep.subr.mxu0 0.0
        %343 = vmatpush2.msra.mxu0 0.0
        %344 = vmatprep.subr.mxu0 0.0
        %345 = vmatpush2.msra.mxu0 0.0
        %346 = vmatprep.subr.mxu0 0.0
        %347 = vmatpush2.msra.mxu0 0.0
        %348 = vmatprep.subr.mxu0 0.0
        %349 = vmatpush2.msra.mxu0 0.0
        %350 = vmatprep.mubr.f32.mxu0 0.0
        %351 = vmatmul.mubr.f32.gmra.mxu0 %v238
        %v352 = vpop.f32.mrf.mxu0
        %v353 = vadd.f32 0.0, %v352
        %v354 = vpop.f32.mrf.mxu0
        %355 = vmatprep.mubr.f32.mxu0 0.0
        %356 = vmatmul.mubr.f32.gmra.mxu0 %v239
        %v357 = vpop.f32.mrf.mxu0
        %v358 = vadd.f32 0.0, %v357
        %v359 = vpop.f32.mrf.mxu0
        %360 = vmatprep.mubr.f32.mxu0 0.0
        %361 = vmatmul.mubr.f32.gmra.mxu0 %v240
        %v362 = vpop.f32.mrf.mxu0
        %v363 = vadd.f32 0.0, %v362
        %v364 = vpop.f32.mrf.mxu0
        %365 = vmatprep.mubr.f32.mxu0 0.0
        %366 = vmatmul.mubr.f32.gmra.mxu0 %v241
        %v367 = vpop.f32.mrf.mxu0
        %v368 = vadd.f32 0.0, %v367
        %v369 = vpop.f32.mrf.mxu0
        %370 = vmatprep.mubr.f32.mxu0 0.0
        %371 = vmatmul.mubr.f32.gmra.mxu0 %v242
        %v372 = vpop.f32.mrf.mxu0
        %v373 = vadd.f32 0.0, %v372
        %v374 = vpop.f32.mrf.mxu0
        %375 = vmatprep.mubr.f32.mxu0 0.0
        %376 = vmatmul.mubr.f32.gmra.mxu0 %v243
        %v377 = vpop.f32.mrf.mxu0
        %v378 = vadd.f32 0.0, %v377
        %v379 = vpop.f32.mrf.mxu0
        %380 = vmatprep.mubr.f32.mxu0 0.0
        %381 = vmatmul.mubr.f32.gmra.mxu0 %v244
        %v382 = vpop.f32.mrf.mxu0
        %v383 = vadd.f32 0.0, %v382
        %v384 = vpop.f32.mrf.mxu0
        %385 = vmatprep.mubr.f32.mxu0 0.0
        %386 = vmatmul.mubr.f32.gmra.mxu0 %v245
        %v387 = vpop.f32.mrf.mxu0
        %v388 = vadd.f32 0.0, %v387
        %v389 = vpop.f32.mrf.mxu0
        %390 = vmatprep.mubr.f32.mxu0 0.0
        %391 = vmatmul.mubr.f32.gmra.mxu0 %v246
        %v392 = vpop.f32.mrf.mxu0
        %v393 = vadd.f32 0.0, %v392
        %v394 = vpop.f32.mrf.mxu0
        %395 = vmatprep.mubr.f32.mxu0 0.0
        %396 = vmatmul.mubr.f32.gmra.mxu0 %v247
        %v397 = vpop.f32.mrf.mxu0
        %v398 = vadd.f32 0.0, %v397
        %v399 = vpop.f32.mrf.mxu0
        %400 = vmatprep.mubr.f32.mxu0 0.0
        %401 = vmatmul.mubr.f32.gmra.mxu0 %v248
        %v402 = vpop.f32.mrf.mxu0
        %v403 = vadd.f32 0.0, %v402
        %v404 = vpop.f32.mrf.mxu0
        %405 = vmatprep.mubr.f32.mxu0 0.0
        %406 = vmatmul.mubr.f32.gmra.mxu0 %v249
        %v407 = vpop.f32.mrf.mxu0
        %v408 = vadd.f32 0.0, %v407
        %v409 = vpop.f32.mrf.mxu0
        %410 = vmatprep.mubr.f32.mxu0 0.0
        %411 = vmatmul.mubr.f32.gmra.mxu0 %v250
        %v412 = vpop.f32.mrf.mxu0
        %v413 = vadd.f32 0.0, %v412
        %v414 = vpop.f32.mrf.mxu0
        %415 = vmatprep.mubr.f32.mxu0 0.0
        %416 = vmatmul.mubr.f32.gmra.mxu0 %v251
        %v417 = vpop.f32.mrf.mxu0
        %v418 = vadd.f32 0.0, %v417
        %v419 = vpop.f32.mrf.mxu0
        %420 = vmatprep.mubr.f32.mxu0 0.0
        %421 = vmatmul.mubr.f32.gmra.mxu0 %v252
        %v422 = vpop.f32.mrf.mxu0
        %v423 = vadd.f32 0.0, %v422
        %v424 = vpop.f32.mrf.mxu0
        %425 = vmatprep.mubr.f32.mxu0 0.0
        %426 = vmatmul.mubr.f32.gmra.mxu0 %v253
        %v427 = vpop.f32.mrf.mxu0
        %v428 = vadd.f32 0.0, %v427
        %v429 = vpop.f32.mrf.mxu0
        %430 = vmatprep.mubr.f32.mxu0 0.0
        %431 = vmatmul.mubr.f32.gmra.mxu0 %v254
        %v432 = vpop.f32.mrf.mxu0
        %v433 = vadd.f32 0.0, %v432
        %v434 = vpop.f32.mrf.mxu0
        %435 = vmatprep.mubr.f32.mxu0 0.0
        %436 = vmatmul.mubr.f32.gmra.mxu0 %v255
        %v437 = vpop.f32.mrf.mxu0
        %v438 = vadd.f32 0.0, %v437
        %v439 = vpop.f32.mrf.mxu0
        %440 = vmatprep.mubr.f32.mxu0 0.0
        %441 = vmatmul.mubr.f32.gmra.mxu0 %v256
        %v442 = vpop.f32.mrf.mxu0
        %v443 = vadd.f32 0.0, %v442
        %v444 = vpop.f32.mrf.mxu0
        %445 = vmatprep.mubr.f32.mxu0 0.0
        %446 = vmatmul.mubr.f32.gmra.mxu0 %v257
        %v447 = vpop.f32.mrf.mxu0
        %v448 = vadd.f32 0.0, %v447
        %v449 = vpop.f32.mrf.mxu0
        %450 = vmatprep.mubr.f32.mxu0 0.0
        %451 = vmatmul.mubr.f32.gmra.mxu0 %v258
        %v452 = vpop.f32.mrf.mxu0
        %v453 = vadd.f32 0.0, %v452
        %v454 = vpop.f32.mrf.mxu0
        %455 = vmatprep.mubr.f32.mxu0 0.0
        %456 = vmatmul.mubr.f32.gmra.mxu0 %v259
        %v457 = vpop.f32.mrf.mxu0
        %v458 = vadd.f32 0.0, %v457
        %v459 = vpop.f32.mrf.mxu0
        %460 = vmatprep.mubr.f32.mxu0 0.0
        %461 = vmatmul.mubr.f32.gmra.mxu0 %v260
        %v462 = vpop.f32.mrf.mxu0
        %v463 = vadd.f32 0.0, %v462
        %v464 = vpop.f32.mrf.mxu0
        %465 = vmatprep.mubr.f32.mxu0 0.0
        %466 = vmatmul.mubr.f32.gmra.mxu0 %v261
        %v467 = vpop.f32.mrf.mxu0
        %v468 = vadd.f32 0.0, %v467
        %v469 = vpop.f32.mrf.mxu0
        %470 = vmatprep.mubr.f32.mxu0 0.0
        %471 = vmatmul.mubr.f32.gmra.mxu0 %v262
        %v472 = vpop.f32.mrf.mxu0
        %v473 = vadd.f32 0.0, %v472
        %v474 = vpop.f32.mrf.mxu0
        %475 = vmatprep.mubr.f32.mxu0 0.0
        %476 = vmatmul.mubr.f32.gmra.mxu0 %v263
        %v477 = vpop.f32.mrf.mxu0
        %v478 = vadd.f32 0.0, %v477
        %v479 = vpop.f32.mrf.mxu0
        %480 = vmatprep.mubr.f32.mxu0 0.0
        %481 = vmatmul.mubr.f32.gmra.mxu0 %v264
        %v482 = vpop.f32.mrf.mxu0
        %v483 = vadd.f32 0.0, %v482
        %v484 = vpop.f32.mrf.mxu0
        %485 = vmatprep.mubr.f32.mxu0 0.0
        %486 = vmatmul.mubr.f32.gmra.mxu0 %v265
        %v487 = vpop.f32.mrf.mxu0
        %v488 = vadd.f32 0.0, %v487
        %v489 = vpop.f32.mrf.mxu0
        %490 = vmatprep.mubr.f32.mxu0 0.0
        %491 = vmatmul.mubr.f32.gmra.mxu0 %v266
        %v492 = vpop.f32.mrf.mxu0
        %v493 = vadd.f32 0.0, %v492
        %v494 = vpop.f32.mrf.mxu0
        %495 = vmatprep.mubr.f32.mxu0 0.0
        %496 = vmatmul.mubr.f32.gmra.mxu0 %v267
        %v497 = vpop.f32.mrf.mxu0
        %v498 = vadd.f32 0.0, %v497
        %v499 = vpop.f32.mrf.mxu0
        %500 = vmatprep.mubr.f32.mxu0 0.0
        %501 = vmatmul.mubr.f32.gmra.mxu0 %v268
        %v502 = vpop.f32.mrf.mxu0
        %v503 = vadd.f32 0.0, %v502
        %v504 = vpop.f32.mrf.mxu0
        %505 = vmatprep.mubr.f32.mxu0 0.0
        %506 = vmatmul.mubr.f32.gmra.mxu0 %v269
        %v507 = vpop.f32.mrf.mxu0
        %v508 = vadd.f32 0.0, %v507
        %v509 = vpop.f32.mrf.mxu0
        %510 = vdwg.mxu0
        %511 = vst [vmem:[%s228] sm:$0xff] %v353
        %512 = vst [vmem:[%s228 + $0x8] sm:$0xff] %v358
        %513 = vst [vmem:[%s228 + $0x10] sm:$0xff] %v363
        %514 = vst [vmem:[%s228 + $0x18] sm:$0xff] %v368
        %515 = vst [vmem:[%s228 + $0x20] sm:$0xff] %v373
        %516 = vst [vmem:[%s228 + $0x28] sm:$0xff] %v378
        %517 = vst [vmem:[%s228 + $0x30] sm:$0xff] %v383
        %518 = vst [vmem:[%s228 + $0x38] sm:$0xff] %v388
        %519 = vst [vmem:[%s228 + $0x40] sm:$0xff] %v393
        %520 = vst [vmem:[%s228 + $0x48] sm:$0xff] %v398
        %521 = vst [vmem:[%s228 + $0x50] sm:$0xff] %v403
        %522 = vst [vmem:[%s228 + $0x58] sm:$0xff] %v408
        %523 = vst [vmem:[%s228 + $0x60] sm:$0xff] %v413
        %524 = vst [vmem:[%s228 + $0x68] sm:$0xff] %v418
        %525 = vst [vmem:[%s228 + $0x70] sm:$0xff] %v423
        %526 = vst [vmem:[%s228 + $0x78] sm:$0xff] %v428
        %527 = vst [vmem:[%s228 + $0x80] sm:$0xff] %v433
        %528 = vst [vmem:[%s228 + $0x88] sm:$0xff] %v438
        %529 = vst [vmem:[%s228 + $0x90] sm:$0xff] %v443
        %530 = vst [vmem:[%s228 + $0x98] sm:$0xff] %v448
        %531 = vst [vmem:[%s228 + $0xa0] sm:$0xff] %v453
        %532 = vst [vmem:[%s228 + $0xa8] sm:$0xff] %v458
        %533 = vst [vmem:[%s228 + $0xb0] sm:$0xff] %v463
        %534 = vst [vmem:[%s228 + $0xb8] sm:$0xff] %v468
        %535 = vst [vmem:[%s228 + $0xc0] sm:$0xff] %v473
        %536 = vst [vmem:[%s228 + $0xc8] sm:$0xff] %v478
        %537 = vst [vmem:[%s228 + $0xd0] sm:$0xff] %v483
        %538 = vst [vmem:[%s228 + $0xd8] sm:$0xff] %v488
        %539 = vst [vmem:[%s228 + $0xe0] sm:$0xff] %v493
        %540 = vst [vmem:[%s228 + $0xe8] sm:$0xff] %v498
        %541 = vst [vmem:[%s228 + $0xf0] sm:$0xff] %v503
        %542 = vst [vmem:[%s228 + $0xf8] sm:$0xff] %v508
        %v543 = vadd.f32 %v353, %v358
        %v544 = vadd.f32 %v543, %v363
        %v545 = vadd.f32 %v544, %v368
        %v546 = vadd.f32 %v545, %v373
        %v547 = vadd.f32 %v546, %v378
        %v548 = vadd.f32 %v547, %v383
        %v549 = vadd.f32 %v548, %v388
        %v550 = vadd.f32 %v549, %v393
        %v551 = vadd.f32 %v550, %v398
        %v552 = vadd.f32 %v551, %v403
        %v553 = vadd.f32 %v552, %v408
        %v554 = vadd.f32 %v553, %v413
        %v555 = vadd.f32 %v554, %v418
        %v556 = vadd.f32 %v555, %v423
        %v557 = vadd.f32 %v556, %v428
        %v558 = vadd.f32 %v557, %v433
        %v559 = vadd.f32 %v558, %v438
        %v560 = vadd.f32 %v559, %v443
        %v561 = vadd.f32 %v560, %v448
        %v562 = vadd.f32 %v561, %v453
        %v563 = vadd.f32 %v562, %v458
        %v564 = vadd.f32 %v563, %v463
        %v565 = vadd.f32 %v564, %v468
        %v566 = vadd.f32 %v565, %v473
        %v567 = vadd.f32 %v566, %v478
        %v568 = vadd.f32 %v567, %v483
        %v569 = vadd.f32 %v568, %v488
        %v570 = vadd.f32 %v569, %v493
        %v571 = vadd.f32 %v570, %v498
        %v572 = vadd.f32 %v571, %v503
        %v573 = vadd.f32 %v572, %v508
        %v574 = vrot.slane %v573, 4
        %v575 = vadd.f32 %v573, %v574
        %v576 = vrot.slane %v575, 2
        %v577 = vadd.f32 %v575, %v576
        %v578 = vrot.slane %v577, 1
        %v579 = vadd.f32 %v577, %v578
        %v580 = vmul.f32 %v579, 0.00390625
        %v581 = vsub.f32 %v353, %v580
        %v582 = vsub.f32 %v358, %v580
        %v583 = vsub.f32 %v363, %v580
        %v584 = vsub.f32 %v368, %v580
        %v585 = vsub.f32 %v373, %v580
        %v586 = vsub.f32 %v378, %v580
        %v587 = vsub.f32 %v383, %v580
        %v588 = vsub.f32 %v388, %v580
        %v589 = vsub.f32 %v393, %v580
        %v590 = vsub.f32 %v398, %v580
        %v591 = vsub.f32 %v403, %v580
        %v592 = vsub.f32 %v408, %v580
        %v593 = vsub.f32 %v413, %v580
        %v594 = vsub.f32 %v418, %v580
        %v595 = vsub.f32 %v423, %v580
        %v596 = vsub.f32 %v428, %v580
        %v597 = vsub.f32 %v433, %v580
        %v598 = vsub.f32 %v438, %v580
        %v599 = vsub.f32 %v443, %v580
        %v600 = vsub.f32 %v448, %v580
        %v601 = vsub.f32 %v453, %v580
        %v602 = vsub.f32 %v458, %v580
        %v603 = vsub.f32 %v463, %v580
        %v604 = vsub.f32 %v468, %v580
        %v605 = vsub.f32 %v473, %v580
        %v606 = vsub.f32 %v478, %v580
        %v607 = vsub.f32 %v483, %v580
        %v608 = vsub.f32 %v488, %v580
        %v609 = vsub.f32 %v493, %v580
        %v610 = vsub.f32 %v498, %v580
        %v611 = vsub.f32 %v503, %v580
        %v612 = vsub.f32 %v508, %v580
        %v613 = vmul.f32 %v581, %v581
        %v614 = vmul.f32 %v582, %v582
        %v615 = vmul.f32 %v583, %v583
        %v616 = vmul.f32 %v584, %v584
        %v617 = vmul.f32 %v585, %v585
        %v618 = vmul.f32 %v586, %v586
        %v619 = vmul.f32 %v587, %v587
        %v620 = vmul.f32 %v588, %v588
        %v621 = vmul.f32 %v589, %v589
        %v622 = vmul.f32 %v590, %v590
        %v623 = vmul.f32 %v591, %v591
        %v624 = vmul.f32 %v592, %v592
        %v625 = vmul.f32 %v593, %v593
        %v626 = vmul.f32 %v594, %v594
        %v627 = vmul.f32 %v595, %v595
        %v628 = vmul.f32 %v596, %v596
        %v629 = vmul.f32 %v597, %v597
        %v630 = vmul.f32 %v598, %v598
        %v631 = vmul.f32 %v599, %v599
        %v632 = vmul.f32 %v600, %v600
        %v633 = vmul.f32 %v601, %v601
        %v634 = vmul.f32 %v602, %v602
        %v635 = vmul.f32 %v603, %v603
        %v636 = vmul.f32 %v604, %v604
        %v637 = vmul.f32 %v605, %v605
        %v638 = vmul.f32 %v606, %v606
        %v639 = vmul.f32 %v607, %v607
        %v640 = vmul.f32 %v608, %v608
        %v641 = vmul.f32 %v609, %v609
        %v642 = vmul.f32 %v610, %v610
        %v643 = vmul.f32 %v611, %v611
        %v644 = vmul.f32 %v612, %v612
        %v645 = vadd.f32 %v613, %v614
        %v646 = vadd.f32 %v645, %v615
        %v647 = vadd.f32 %v646, %v616
        %v648 = vadd.f32 %v647, %v617
        %v649 = vadd.f32 %v648, %v618
        %v650 = vadd.f32 %v649, %v619
        %v651 = vadd.f32 %v650, %v620
        %v652 = vadd.f32 %v651, %v621
        %v653 = vadd.f32 %v652, %v622
        %v654 = vadd.f32 %v653, %v623
        %v655 = vadd.f32 %v654, %v624
        %v656 = vadd.f32 %v655, %v625
        %v657 = vadd.f32 %v656, %v626
        %v658 = vadd.f32 %v657, %v627
        %v659 = vadd.f32 %v658, %v628
        %v660 = vadd.f32 %v659, %v629
        %v661 = vadd.f32 %v660, %v630
        %v662 = vadd.f32 %v661, %v631
        %v663 = vadd.f32 %v662, %v632
        %v664 = vadd.f32 %v663, %v633
        %v665 = vadd.f32 %v664, %v634
        %v666 = vadd.f32 %v665, %v635
        %v667 = vadd.f32 %v666, %v636
        %v668 = vadd.f32 %v667, %v637
        %v669 = vadd.f32 %v668, %v638
        %v670 = vadd.f32 %v669, %v639
        %v671 = vadd.f32 %v670, %v640
        %v672 = vadd.f32 %v671, %v641
        %v673 = vadd.f32 %v672, %v642
        %v674 = vadd.f32 %v673, %v643
        %v675 = vadd.f32 %v674, %v644
        %v676 = vrot.slane %v675, 4
        %v677 = vadd.f32 %v675, %v676
        %v678 = vrot.slane %v677, 2
        %v679 = vadd.f32 %v677, %v678
        %v680 = vrot.slane %v679, 1
        %v681 = vadd.f32 %v679, %v680
        %vm682 = vcmask 1040384
        %v683 = vsel %vm682, %v579, %v681
        %684 = vst [vmem:[%s235] sm:$0x3] %v683
        %s685 = sand.u32 %s96, 1
        %s686 = scalar_lea.sflag [#allocation4], %s685
        %s687 = sand.u32 %s96, 1
        %s688 = smul.addr %s687, 256
        %s689 = scalar_lea.vmem [#allocation7], %s688
        %s690 = sand.u32 %s124, 1
        %s691 = scalar_lea.sflag [#allocation9], %s690
        %s692 = sand.u32 %s124, 1
        %s693 = smul.addr %s692, 2
        %s694 = scalar_lea.vmem [#allocation8], %s693
        // Predicated region
        $region37: #{tpu_custom_call.1} parent=27 // pred_check
          %p695 = pneg %p106
        $region38: #{tpu_custom_call.1} parent=27 // pred_check_branch
          %697 = sbr.rel (%p695) target = $region40
        $region39: #{tpu_custom_call.1} parent=27 // pred_region
          %s698 = smul.u32 16, %s30
          %s700 = ssub.s32 4096, 4096
          %701 = vsyncadd %s686, %s700
          %s702 = smul.addr %s698, 2
          %s703 = smul.addr %s29, 32
          %s704 = sadd.s32 %s702, %s703
          %s705 = smul.addr %s704, 128
          %s706 = scalar_lea.hbm %s2, %s705
          %s707 = sshll.u32 %s689, 4
          %s708 = int_to_ptr.vmem [resolvable:$true] %s707
          %713 = dma.vmem_to_hbm [thread:$0]  %s708, 4096, %s706, %s686, 128, 128, 8
        $region40: #{tpu_custom_call.1} parent=27 // pred_fallthru
          _
        // Predicated region
        $region41: #{tpu_custom_call.1} parent=27 // pred_check
          %p714 = pneg %p134
        $region42: #{tpu_custom_call.1} parent=27 // pred_check_branch
          %716 = sbr.rel (%p714) target = $region44
        $region43: #{tpu_custom_call.1} parent=27 // pred_region
          %s718 = ssub.s32 32, 32
          %719 = vsyncadd %s691, %s718
          %s720 = sadd.s32 %s30, %s29
          %s721 = smul.addr %s720, 32
          %s722 = scalar_lea.hbm %s3, %s721
          %s724 = sshll.u32 %s694, 4
          %s725 = int_to_ptr.vmem [resolvable:$true] %s724
          %727 = dma.vmem_to_hbm [thread:$0]  %s725, 32, %s722, %s691
        $region44: #{tpu_custom_call.1} parent=27 // pred_fallthru
          _
      $region28: #{tpu_custom_call.1} parent=5 // pred_fallthru
        _
      %p728 = scmp.le.s32.totalorder 2, %s20
      // Predicated region
      $region45: #{tpu_custom_call.1} parent=5 // pred_check
        %p729 = pneg %p728
      $region46: #{tpu_custom_call.1} parent=5 // pred_check_branch
        %731 = sbr.rel (%p729) target = $region48
      $region47: #{tpu_custom_call.1} parent=5 // pred_region
        %s732 = ssub.s32 %s20, 2
        // Predicated region
        $region49: #{tpu_custom_call.1} parent=47 // pred_check
          %p733 = pneg %p112
        $region50: #{tpu_custom_call.1} parent=47 // pred_check_branch
          %735 = sbr.rel (%p733) target = $region52
        $region51: #{tpu_custom_call.1} parent=47 // pred_region
          %s736 = sand.u32 %s97, 1
          %s737 = scalar_lea.sflag [#allocation4], %s736
          %s738 = sand.u32 %s97, 1
          %s739 = smul.addr %s738, 256
          %s740 = scalar_lea.vmem [#allocation7], %s739
          %741 = dma.done %s737, 4096
        $region52: #{tpu_custom_call.1} parent=47 // pred_fallthru
          _
        // Predicated region
        $region53: #{tpu_custom_call.1} parent=47 // pred_check
          %p742 = pneg %p140
        $region54: #{tpu_custom_call.1} parent=47 // pred_check_branch
          %744 = sbr.rel (%p742) target = $region56
        $region55: #{tpu_custom_call.1} parent=47 // pred_region
          %s745 = sand.u32 %s125, 1
          %s746 = scalar_lea.sflag [#allocation9], %s745
          %s747 = sand.u32 %s125, 1
          %s748 = smul.addr %s747, 2
          %s749 = scalar_lea.vmem [#allocation8], %s748
          %750 = dma.done %s746, 32
        $region56: #{tpu_custom_call.1} parent=47 // pred_fallthru
          _
      $region48: #{tpu_custom_call.1} parent=5 // pred_fallthru
        _
    $region6: #{tpu_custom_call.1} parent=1 // loop_footer
      %s24 = sadd.s32 1, %s20
    $region7: #{tpu_custom_call.1} parent=1 // loop_footer_branch
      %19 = sbr.rel target = $region3
    $region8: #{tpu_custom_call.1} parent=1 // loop_exit
      _
    %751 = vsyncpa [#allocation3], 1
    %s752 = scalar_lea.sflag [#allocation3], 1
    %753 = vsyncpa %s752, 1
    %754 = vsyncpa [#allocation6], 1
    %755 = vsyncpa [#allocation4], 1
    %s756 = scalar_lea.sflag [#allocation4], 1
    %757 = vsyncpa %s756, 1
    %758 = vsyncpa [#allocation9], 1
    %s759 = scalar_lea.sflag [#allocation9], 1
    %760 = vsyncpa %s759, 1

</llo_original>
